<compile_context>
chip_gen: v7x
topology: tpu7x:2x2x1
jax: 0.10.0
libtpu: 0.0.40
codegen_flags: <defaults>
</compile_context>

<pallas_src>
import functools

import jax
import jax.numpy as jnp
from jax import lax
from jax.experimental import pallas as pl
from jax.experimental.pallas import tpu as pltpu


# Conservative working-set budget so the same tiles fit v5e/v6e (128 MiB) and
# v7x (64 MiB physical VMEM per TensorCore).
_VMEM_TILE_BUDGET = 40 * 1024 * 1024


def _vmem_limit(need_bytes):
    # Headroom above the estimated working set, capped below v7x's 64 MiB.
    return int(min(max(need_bytes * 5 // 4, 32 * 1024 * 1024), 56 * 1024 * 1024))


# ---------------------------------------------------------------------------
# Stage 1: fused QKV projections over flattened tokens.
# ---------------------------------------------------------------------------
def _qkv_proj_kernel(q_ref, k_ref, v_ref, wq_ref, wk_ref, wv_ref,
                     qp_ref, kp_ref, vp_ref):
    qp_ref[...] = jnp.dot(q_ref[...], wq_ref[...],
                          preferred_element_type=jnp.float32)
    kp_ref[...] = jnp.dot(k_ref[...], wk_ref[...],
                          preferred_element_type=jnp.float32)
    vp_ref[...] = jnp.dot(v_ref[...], wv_ref[...],
                          preferred_element_type=jnp.float32)


def _proj_vmem_bytes(tm, D):
    # 3 weights x 2 buffers + (3 in + 3 out) x 2 buffers, all f32.
    return 4 * (6 * D * D + 12 * tm * D)


def _pick_row_tile(rows, D):
    if rows <= 256:
        return rows                       # full dim -> always a legal block
    for tm in (1024, 512, 256, 128, 64, 8):
        if tm > rows:
            continue
        if _proj_vmem_bytes(tm, D) <= _VMEM_TILE_BUDGET:
            return tm
    return 8


def _qkv_projection(q2d, k2d, v2d, wq, wk, wv, *, tm):
    rows, D = q2d.shape
    row_spec = pl.BlockSpec((tm, D), lambda i: (i, 0))
    w_spec = pl.BlockSpec((D, D), lambda i: (0, 0))
    return pl.pallas_call(
        _qkv_proj_kernel,
        out_shape=tuple(jax.ShapeDtypeStruct((rows, D), jnp.float32)
                        for _ in range(3)),
        grid_spec=pltpu.PrefetchScalarGridSpec(
            num_scalar_prefetch=0,
            grid=(pl.cdiv(rows, tm),),
            in_specs=[row_spec, row_spec, row_spec, w_spec, w_spec, w_spec],
            out_specs=[row_spec, row_spec, row_spec],
        ),
        compiler_params=pltpu.CompilerParams(
            dimension_semantics=("parallel",),
            vmem_limit_bytes=_vmem_limit(_proj_vmem_bytes(tm, D))),
    )(q2d, k2d, v2d, wq, wk, wv)


# ---------------------------------------------------------------------------
# Stage 2: query-tiled attention. K/V for the current batch element stay
# resident across the query-tile axis, so softmax over keys is exact.
# ---------------------------------------------------------------------------
def _attention_kernel(qp_ref, kp_ref, vp_ref, attn_ref, out_ref, *, scale):
    qt = qp_ref[0]                        # (TQ, D)
    kt = kp_ref[0]                        # (N, D)
    vt = vp_ref[0]                        # (N, D)

    # s = q @ k^T without materializing a transpose (feeds the MXU directly).
    s = lax.dot_general(qt, kt,
                        dimension_numbers=(((1,), (1,)), ((), ())),
                        preferred_element_type=jnp.float32)    # (TQ, N)

    # Exact softmax over the full key axis.
    m = jnp.max(s, axis=-1, keepdims=True)
    e = jnp.exp(s - m)
    p = e * pl.reciprocal(jnp.sum(e, axis=-1, keepdims=True), approx=True)

    attn_ref[0] = p.astype(attn_ref.dtype)

    # Apply the scale to the small (TQ, D) result, not the (TQ, N) matrix.
    # (Optionally cast p/vt to bf16 here for more MXU throughput on v6e/v7x.)
    out_ref[0] = (scale * jnp.dot(p, vt, preferred_element_type=jnp.float32)
                  ).astype(out_ref.dtype)


def _attn_vmem_bytes(N, D, tq):
    # 2x q tile + 2x K + 2x V + 2x attn tile + 2x out tile, f32.
    return 4 * (2 * tq * D + 4 * N * D + 2 * tq * N + 2 * tq * D)


def _pick_query_tile(N, D):
    if N <= 128:
        return N                          # single tile; equals the full dim
    for tq in (1024, 512, 256, 128):
        if tq > N:
            continue
        if _attn_vmem_bytes(N, D, tq) <= _VMEM_TILE_BUDGET:
            return tq
    return 128


def attention_module_forward(q, k, v, wq, wk, wv):
    """q, k, v: (B, N, D) float32. wq/wk/wv: (D, D) already (in, out)-layout."""
    B, N, D = q.shape
    scale = float(D) ** (-0.5)

    # Stage 1: projections on the flattened token axis (lane-dense matmul).
    rows = B * N
    tm = _pick_row_tile(rows, D)
    qp, kp, vp = _qkv_projection(q.reshape(rows, D), k.reshape(rows, D),
                                 v.reshape(rows, D), wq, wk, wv, tm=tm)
    qp = qp.reshape(B, N, D)
    kp = kp.reshape(B, N, D)
    vp = vp.reshape(B, N, D)

    # Stage 2: query-tiled attention.
    tq = _pick_query_tile(N, D)
    kernel = functools.partial(_attention_kernel, scale=scale)

    grid_spec = pltpu.PrefetchScalarGridSpec(
        num_scalar_prefetch=0,
        grid=(B, pl.cdiv(N, tq)),
        in_specs=[
            pl.BlockSpec((1, tq, D), lambda b, t: (b, t, 0)),   # q tile
            pl.BlockSpec((1, N, D), lambda b, t: (b, 0, 0)),    # K (resident over t)
            pl.BlockSpec((1, N, D), lambda b, t: (b, 0, 0)),    # V (resident over t)
        ],
        out_specs=[
            pl.BlockSpec((1, tq, N), lambda b, t: (b, t, 0)),   # attn_confusion
            pl.BlockSpec((1, tq, D), lambda b, t: (b, t, 0)),   # out
        ],
    )

    attn_confusion, out = pl.pallas_call(
        kernel,
        out_shape=(
            jax.ShapeDtypeStruct((B, N, N), jnp.float32),
            jax.ShapeDtypeStruct((B, N, D), jnp.float32),
        ),
        grid_spec=grid_spec,
        compiler_params=pltpu.CompilerParams(
            dimension_semantics=("parallel", "parallel"),
            vmem_limit_bytes=_vmem_limit(_attn_vmem_bytes(N, D, tq))),
    )(qp, kp, vp)
    return attn_confusion, out


def _reference(q, k, v, wq, wk, wv):
    D = q.shape[-1]
    scale = float(D) ** (-0.5)
    qp = q @ wq
    kp = k @ wk
    vp = v @ wv
    s = jnp.einsum("bnd,bmd->bnm", qp, kp)
    p = jax.nn.softmax(s, axis=-1)
    out = jnp.einsum("bnm,bmd->bnd", scale * p, vp)
    return p, out


if __name__ == "__main__":
    B, N, D = 2, 8, 32

    key = jax.random.PRNGKey(0)
    kq, kk, kv, kwq, kwk, kwv = jax.random.split(key, 6)

    q = jax.random.normal(kq, (B, N, D), dtype=jnp.float32)
    k = jax.random.normal(kk, (B, N, D), dtype=jnp.float32)
    v = jax.random.normal(kv, (B, N, D), dtype=jnp.float32)

    # Deterministic "Linear(dim, dim, bias=False)" weights, stored as (in, out).
    bound = 1.0 / (D ** 0.5)
    wq = jax.random.uniform(kwq, (D, D), jnp.float32, -bound, bound)
    wk = jax.random.uniform(kwk, (D, D), jnp.float32, -bound, bound)
    wv = jax.random.uniform(kwv, (D, D), jnp.float32, -bound, bound)

    attn_confusion, out = attention_module_forward(q, k, v, wq, wk, wv)
    jax.block_until_ready((attn_confusion, out))

    # Sanity check against a plain-JAX reference (approx reciprocal -> looser tol).
    ref_attn, ref_out = _reference(q, k, v, wq, wk, wv)
    assert jnp.allclose(attn_confusion, ref_attn, atol=2e-3, rtol=2e-3)
    assert jnp.allclose(out, ref_out, atol=2e-3, rtol=2e-3)

    print("KERNEL_OK")
</pallas_src>

<mosaic_0001>
module attributes {stable_mosaic.version = 11 : i64} {
  func.func @_qkv_proj_kernel(%arg0: i32, %arg1: memref<16x32xf32, #tpu.memory_space<vmem>>, %arg2: memref<16x32xf32, #tpu.memory_space<vmem>>, %arg3: memref<16x32xf32, #tpu.memory_space<vmem>>, %arg4: memref<32x32xf32, #tpu.memory_space<vmem>>, %arg5: memref<32x32xf32, #tpu.memory_space<vmem>>, %arg6: memref<32x32xf32, #tpu.memory_space<vmem>>, %arg7: memref<16x32xf32, #tpu.memory_space<vmem>>, %arg8: memref<16x32xf32, #tpu.memory_space<vmem>>, %arg9: memref<16x32xf32, #tpu.memory_space<vmem>>) attributes {dimension_semantics = [#tpu.dimension_semantics<parallel>], iteration_bounds = array<i64: 1>, scalar_prefetch = 0 : i64, scratch_operands = 0 : i64, tpu.core_type = #tpu.core_type<tc>, window_params = [{transform_indices = @transform_0, window_bounds = array<i64: 16, 32>}, {transform_indices = @transform_1, window_bounds = array<i64: 16, 32>}, {transform_indices = @transform_2, window_bounds = array<i64: 16, 32>}, {pipeline_mode = #tpu.pipeline_mode<synchronous>, transform_indices = @transform_3, window_bounds = array<i64: 32, 32>}, {pipeline_mode = #tpu.pipeline_mode<synchronous>, transform_indices = @transform_4, window_bounds = array<i64: 32, 32>}, {pipeline_mode = #tpu.pipeline_mode<synchronous>, transform_indices = @transform_5, window_bounds = array<i64: 32, 32>}, {transform_indices = @transform_6, window_bounds = array<i64: 16, 32>}, {transform_indices = @transform_7, window_bounds = array<i64: 16, 32>}, {transform_indices = @transform_8, window_bounds = array<i64: 16, 32>}]} {
    %c0 = arith.constant 0 : index
    %c0_0 = arith.constant 0 : index
    %0 = vector.load %arg1[%c0, %c0_0] : memref<16x32xf32, #tpu.memory_space<vmem>>, vector<16x32xf32>
    %c0_1 = arith.constant 0 : index
    %c0_2 = arith.constant 0 : index
    %1 = vector.load %arg4[%c0_1, %c0_2] : memref<32x32xf32, #tpu.memory_space<vmem>>, vector<32x32xf32>
    %cst = arith.constant dense<0.000000e+00> : vector<16x32xf32>
    %2 = tpu.matmul %0, %1, %cst {dimension_numbers = #tpu.dot_dimension_numbers<[1], [0], [0], [1], [0, 0, 1, 1], [], []>} : vector<16x32xf32>, vector<32x32xf32>, vector<16x32xf32> -> vector<16x32xf32>
    %c0_3 = arith.constant 0 : index
    %c0_4 = arith.constant 0 : index
    %3 = vector.load %arg7[%c0_3, %c0_4] : memref<16x32xf32, #tpu.memory_space<vmem>>, vector<16x32xf32>
    tpu.vector_store %arg7[%c0_3, %c0_4], %2 {strides = array<i32>} : memref<16x32xf32, #tpu.memory_space<vmem>>, vector<16x32xf32>,
    %c0_5 = arith.constant 0 : index
    %c0_6 = arith.constant 0 : index
    %4 = vector.load %arg2[%c0_5, %c0_6] : memref<16x32xf32, #tpu.memory_space<vmem>>, vector<16x32xf32>
    %c0_7 = arith.constant 0 : index
    %c0_8 = arith.constant 0 : index
    %5 = vector.load %arg5[%c0_7, %c0_8] : memref<32x32xf32, #tpu.memory_space<vmem>>, vector<32x32xf32>
    %cst_9 = arith.constant dense<0.000000e+00> : vector<16x32xf32>
    %6 = tpu.matmul %4, %5, %cst_9 {dimension_numbers = #tpu.dot_dimension_numbers<[1], [0], [0], [1], [0, 0, 1, 1], [], []>} : vector<16x32xf32>, vector<32x32xf32>, vector<16x32xf32> -> vector<16x32xf32>
    %c0_10 = arith.constant 0 : index
    %c0_11 = arith.constant 0 : index
    %7 = vector.load %arg8[%c0_10, %c0_11] : memref<16x32xf32, #tpu.memory_space<vmem>>, vector<16x32xf32>
    tpu.vector_store %arg8[%c0_10, %c0_11], %6 {strides = array<i32>} : memref<16x32xf32, #tpu.memory_space<vmem>>, vector<16x32xf32>,
    %c0_12 = arith.constant 0 : index
    %c0_13 = arith.constant 0 : index
    %8 = vector.load %arg3[%c0_12, %c0_13] : memref<16x32xf32, #tpu.memory_space<vmem>>, vector<16x32xf32>
    %c0_14 = arith.constant 0 : index
    %c0_15 = arith.constant 0 : index
    %9 = vector.load %arg6[%c0_14, %c0_15] : memref<32x32xf32, #tpu.memory_space<vmem>>, vector<32x32xf32>
    %cst_16 = arith.constant dense<0.000000e+00> : vector<16x32xf32>
    %10 = tpu.matmul %8, %9, %cst_16 {dimension_numbers = #tpu.dot_dimension_numbers<[1], [0], [0], [1], [0, 0, 1, 1], [], []>} : vector<16x32xf32>, vector<32x32xf32>, vector<16x32xf32> -> vector<16x32xf32>
    %c0_17 = arith.constant 0 : index
    %c0_18 = arith.constant 0 : index
    %11 = vector.load %arg9[%c0_17, %c0_18] : memref<16x32xf32, #tpu.memory_space<vmem>>, vector<16x32xf32>
    tpu.vector_store %arg9[%c0_17, %c0_18], %10 {strides = array<i32>} : memref<16x32xf32, #tpu.memory_space<vmem>>, vector<16x32xf32>,
    return
  }
  func.func @transform_0(%arg0: i32) -> (i32, i32) {
    %c0_i32 = arith.constant 0 : i32
    %c0_i32_0 = arith.constant 0 : i32
    return %arg0, %c0_i32 : i32, i32
  }
  func.func @transform_1(%arg0: i32) -> (i32, i32) {
    %c0_i32 = arith.constant 0 : i32
    %c0_i32_0 = arith.constant 0 : i32
    return %arg0, %c0_i32 : i32, i32
  }
  func.func @transform_2(%arg0: i32) -> (i32, i32) {
    %c0_i32 = arith.constant 0 : i32
    %c0_i32_0 = arith.constant 0 : i32
    return %arg0, %c0_i32 : i32, i32
  }
  func.func @transform_3(%arg0: i32) -> (i32, i32) {
    %c0_i32 = arith.constant 0 : i32
    %c0_i32_0 = arith.constant 0 : i32
    %c0_i32_1 = arith.constant 0 : i32
    return %c0_i32, %c0_i32_0 : i32, i32
  }
  func.func @transform_4(%arg0: i32) -> (i32, i32) {
    %c0_i32 = arith.constant 0 : i32
    %c0_i32_0 = arith.constant 0 : i32
    %c0_i32_1 = arith.constant 0 : i32
    return %c0_i32, %c0_i32_0 : i32, i32
  }
  func.func @transform_5(%arg0: i32) -> (i32, i32) {
    %c0_i32 = arith.constant 0 : i32
    %c0_i32_0 = arith.constant 0 : i32
    %c0_i32_1 = arith.constant 0 : i32
    return %c0_i32, %c0_i32_0 : i32, i32
  }
  func.func @transform_6(%arg0: i32) -> (i32, i32) {
    %c0_i32 = arith.constant 0 : i32
    %c0_i32_0 = arith.constant 0 : i32
    return %arg0, %c0_i32 : i32, i32
  }
  func.func @transform_7(%arg0: i32) -> (i32, i32) {
    %c0_i32 = arith.constant 0 : i32
    %c0_i32_0 = arith.constant 0 : i32
    return %arg0, %c0_i32 : i32, i32
  }
  func.func @transform_8(%arg0: i32) -> (i32, i32) {
    %c0_i32 = arith.constant 0 : i32
    %c0_i32_0 = arith.constant 0 : i32
    return %arg0, %c0_i32 : i32, i32
  }
}

</mosaic_0001>

<llo_original>
// kernel: tpu_custom_call.1
$region0: #{tpu_custom_call.1}
  #allocation0 [shape = 'u32[]', space=smem, size = 0x4, offset = 0x4, fixed_abs, tag = 'smem constant byte address 0x4 - core index']
  #allocation1 [shape = 'u32[144,128]{1,0:T(1,128)}', space=vmem, size = 0x12000, scoped, tag = 'internal scratch']
  %s0 = inlined_call_operand.hbm [shape: f32[16,32], index: 0, kind: input, shape index: {}]
  %s1 = inlined_call_operand.hbm [shape: f32[16,32], index: 1, kind: input, shape index: {}]
  %s2 = inlined_call_operand.hbm [shape: f32[16,32], index: 2, kind: input, shape index: {}]
  %s3 = inlined_call_operand.hbm [shape: f32[32,32], index: 3, kind: input, shape index: {}]
  %s4 = inlined_call_operand.hbm [shape: f32[32,32], index: 4, kind: input, shape index: {}]
  %s5 = inlined_call_operand.hbm [shape: f32[32,32], index: 5, kind: input, shape index: {}]
  %s6 = inlined_call_operand.hbm [shape: f32[16,32], index: 6, kind: output, shape index: {0}]
  %s7 = inlined_call_operand.hbm [shape: f32[16,32], index: 7, kind: output, shape index: {1}]
  %s8 = inlined_call_operand.hbm [shape: f32[16,32], index: 8, kind: output, shape index: {2}]
  %9 = xla_tuple %s6, %s7, %s8
  %s10 = sld [smem:[#allocation0]]
  $region74: #{tpu_custom_call.1} parent=0
    _
  %s12 = ssub.s32 1, %s10
  %s13 = scalar_select 0, %s12, %s10
  $region1: #{tpu_custom_call.1} parent=0
    #allocation2 [shape = 'u8[8192]{0}', space=vmem, size = 0x2000, scoped, tag = 'input window, operand 0, single buffered']
    #allocation3 [shape = 's32[1]{0}', space=sflag, size = 0x4, scoped, tag = 'scoped memory for tpu_custom_call.1']
    #allocation4 [shape = 's32[1]{0}', space=sflag, size = 0x4, scoped, tag = 'scoped memory for tpu_custom_call.1']
    #allocation5 [shape = 'u8[8192]{0}', space=vmem, size = 0x2000, scoped, tag = 'input window, operand 1, single buffered']
    #allocation6 [shape = 's32[1]{0}', space=sflag, size = 0x4, scoped, tag = 'scoped memory for tpu_custom_call.1']
    #allocation7 [shape = 'u8[8192]{0}', space=vmem, size = 0x2000, scoped, tag = 'input window, operand 2, single buffered']
    #allocation8 [shape = 'u8[16384]{0}', space=vmem, size = 0x4000, scoped, tag = 'input window, operand 3, single buffered']
    #allocation9 [shape = 's32[1]{0}', space=sflag, size = 0x4, scoped, tag = 'scoped memory for tpu_custom_call.1']
    #allocation10 [shape = 'u8[16384]{0}', space=vmem, size = 0x4000, scoped, tag = 'input window, operand 4, single buffered']
    #allocation11 [shape = 'u8[16384]{0}', space=vmem, size = 0x4000, scoped, tag = 'input window, operand 5, single buffered']
    #allocation12 [shape = 's32[1]{0}', space=sflag, size = 0x4, scoped, tag = 'scoped memory for tpu_custom_call.1']
    #allocation13 [shape = 'u8[8192]{0}', space=vmem, size = 0x2000, scoped, tag = 'output window, operand 0, single buffered']
    #allocation14 [shape = 'u8[8192]{0}', space=vmem, size = 0x2000, scoped, tag = 'output window, operand 1, single buffered']
    #allocation15 [shape = 's32[1]{0}', space=sflag, size = 0x4, scoped, tag = 'scoped memory for tpu_custom_call.1']
    #allocation16 [shape = 'u8[8192]{0}', space=vmem, size = 0x2000, scoped, tag = 'output window, operand 2, single buffered']
    %14 = vsyncpa [#allocation3], 0
    %15 = vsyncpa [#allocation6], 0
    %16 = vsyncpa [#allocation9], 0
    %17 = vsyncpa [#allocation12], 0
    %18 = vsyncpa [#allocation4], 0
    %19 = vsyncpa [#allocation15], 0
    // Predicated region
    $region2: #{tpu_custom_call.1} parent=1 // pred_check
      _
    $region3: #{tpu_custom_call.1} parent=1 // pred_check_branch
      %21 = sbr.rel (0) target = $region5
    $region4: #{tpu_custom_call.1} parent=1 // pred_region
      %s23 = ssub.s32 256, 256
      %24 = vsyncadd [#allocation3], %s23
      %s25 = sshll.u32 [#allocation2], 4
      %s26 = int_to_ptr.vmem [resolvable:$true] %s25
      %31 = dma.hbm_to_vmem [thread:$0]  %s0, 256, %s26, [#allocation3], 128, 128, 8
    $region5: #{tpu_custom_call.1} parent=1 // pred_fallthru
      _
    // Predicated region
    $region6: #{tpu_custom_call.1} parent=1 // pred_check
      _
    $region7: #{tpu_custom_call.1} parent=1 // pred_check_branch
      %33 = sbr.rel (0) target = $region9
    $region8: #{tpu_custom_call.1} parent=1 // pred_region
      %s35 = ssub.s32 256, 256
      %36 = vsyncadd [#allocation6], %s35
      %s37 = sshll.u32 [#allocation5], 4
      %s38 = int_to_ptr.vmem [resolvable:$true] %s37
      %43 = dma.hbm_to_vmem [thread:$0]  %s1, 256, %s38, [#allocation6], 128, 128, 8
    $region9: #{tpu_custom_call.1} parent=1 // pred_fallthru
      _
    // Predicated region
    $region10: #{tpu_custom_call.1} parent=1 // pred_check
      _
    $region11: #{tpu_custom_call.1} parent=1 // pred_check_branch
      %45 = sbr.rel (0) target = $region13
    $region12: #{tpu_custom_call.1} parent=1 // pred_region
      %s47 = ssub.s32 256, 256
      %48 = vsyncadd [#allocation6], %s47
      %s49 = sshll.u32 [#allocation7], 4
      %s50 = int_to_ptr.vmem [resolvable:$true] %s49
      %55 = dma.hbm_to_vmem [thread:$0]  %s2, 256, %s50, [#allocation6], 128, 128, 8
    $region13: #{tpu_custom_call.1} parent=1 // pred_fallthru
      _
    // Predicated region
    $region14: #{tpu_custom_call.1} parent=1 // pred_check
      _
    $region15: #{tpu_custom_call.1} parent=1 // pred_check_branch
      %57 = sbr.rel (0) target = $region17
    $region16: #{tpu_custom_call.1} parent=1 // pred_region
      %s59 = ssub.s32 512, 512
      %60 = vsyncadd [#allocation9], %s59
      %s61 = sshll.u32 [#allocation8], 4
      %s62 = int_to_ptr.vmem [resolvable:$true] %s61
      %67 = dma.hbm_to_vmem [thread:$0]  %s3, 512, %s62, [#allocation9], 128, 128, 8
    $region17: #{tpu_custom_call.1} parent=1 // pred_fallthru
      _
    // Predicated region
    $region18: #{tpu_custom_call.1} parent=1 // pred_check
      _
    $region19: #{tpu_custom_call.1} parent=1 // pred_check_branch
      %69 = sbr.rel (0) target = $region21
    $region20: #{tpu_custom_call.1} parent=1 // pred_region
      %s71 = ssub.s32 512, 512
      %72 = vsyncadd [#allocation9], %s71
      %s73 = sshll.u32 [#allocation10], 4
      %s74 = int_to_ptr.vmem [resolvable:$true] %s73
      %79 = dma.hbm_to_vmem [thread:$0]  %s4, 512, %s74, [#allocation9], 128, 128, 8
    $region21: #{tpu_custom_call.1} parent=1 // pred_fallthru
      _
    // Predicated region
    $region22: #{tpu_custom_call.1} parent=1 // pred_check
      _
    $region23: #{tpu_custom_call.1} parent=1 // pred_check_branch
      %81 = sbr.rel (0) target = $region25
    $region24: #{tpu_custom_call.1} parent=1 // pred_region
      %s83 = ssub.s32 512, 512
      %84 = vsyncadd [#allocation12], %s83
      %s85 = sshll.u32 [#allocation11], 4
      %s86 = int_to_ptr.vmem [resolvable:$true] %s85
      %91 = dma.hbm_to_vmem [thread:$0]  %s5, 512, %s86, [#allocation12], 128, 128, 8
    $region25: #{tpu_custom_call.1} parent=1 // pred_fallthru
      _
    // Predicated region
    $region26: #{tpu_custom_call.1} parent=1 // pred_check
      _
    $region27: #{tpu_custom_call.1} parent=1 // pred_check_branch
      %93 = sbr.rel (0) target = $region29
    $region28: #{tpu_custom_call.1} parent=1 // pred_region
      %94 = dma.done [#allocation3], 256
    $region29: #{tpu_custom_call.1} parent=1 // pred_fallthru
      _
    // Predicated region
    $region30: #{tpu_custom_call.1} parent=1 // pred_check
      _
    $region31: #{tpu_custom_call.1} parent=1 // pred_check_branch
      %96 = sbr.rel (0) target = $region33
    $region32: #{tpu_custom_call.1} parent=1 // pred_region
      %97 = dma.done [#allocation6], 256
    $region33: #{tpu_custom_call.1} parent=1 // pred_fallthru
      _
    // Predicated region
    $region34: #{tpu_custom_call.1} parent=1 // pred_check
      _
    $region35: #{tpu_custom_call.1} parent=1 // pred_check_branch
      %99 = sbr.rel (0) target = $region37
    $region36: #{tpu_custom_call.1} parent=1 // pred_region
      %100 = dma.done [#allocation6], 256
    $region37: #{tpu_custom_call.1} parent=1 // pred_fallthru
      _
    // Predicated region
    $region38: #{tpu_custom_call.1} parent=1 // pred_check
      _
    $region39: #{tpu_custom_call.1} parent=1 // pred_check_branch
      %102 = sbr.rel (0) target = $region41
    $region40: #{tpu_custom_call.1} parent=1 // pred_region
      %103 = dma.done [#allocation9], 512
    $region41: #{tpu_custom_call.1} parent=1 // pred_fallthru
      _
    // Predicated region
    $region42: #{tpu_custom_call.1} parent=1 // pred_check
      _
    $region43: #{tpu_custom_call.1} parent=1 // pred_check_branch
      %105 = sbr.rel (0) target = $region45
    $region44: #{tpu_custom_call.1} parent=1 // pred_region
      %106 = dma.done [#allocation9], 512
    $region45: #{tpu_custom_call.1} parent=1 // pred_fallthru
      _
    // Predicated region
    $region46: #{tpu_custom_call.1} parent=1 // pred_check
      _
    $region47: #{tpu_custom_call.1} parent=1 // pred_check_branch
      %108 = sbr.rel (0) target = $region49
    $region48: #{tpu_custom_call.1} parent=1 // pred_region
      %109 = dma.done [#allocation12], 512
    $region49: #{tpu_custom_call.1} parent=1 // pred_fallthru
      _
    %v110 = vld [vmem:[#allocation2] sm:$0xff]
    %v111 = vld [vmem:[#allocation2 + $0x8] sm:$0xff]
    %v112 = vld [vmem:[#allocation8] sm:$0xff]
    %v113 = vld [vmem:[#allocation8 + $0x8] sm:$0xff]
    %v114 = vld [vmem:[#allocation8 + $0x10] sm:$0xff]
    %v115 = vld [vmem:[#allocation8 + $0x18] sm:$0xff]
    %vm116 = vcmask 261120
    %v118 = vsel %vm116, %v110, 0
    %v121 = vsel %vm116, %v111, 0
    %123 = vmatprep.subr.mxu0 0.0
    %124 = vmatpush1.msra.mxu0 %v112
    %125 = vmatprep.subr.mxu0 0.0
    %126 = vmatpush1.msra.mxu0 %v113
    %127 = vmatprep.subr.mxu0 0.0
    %128 = vmatpush1.msra.mxu0 %v114
    %129 = vmatprep.subr.mxu0 0.0
    %130 = vmatpush1.msra.mxu0 %v115
    %131 = vmatprep.subr.mxu0 0.0
    %132 = vmatpush1.msra.mxu0 0.0
    %133 = vmatprep.subr.mxu0 0.0
    %134 = vmatpush1.msra.mxu0 0.0
    %135 = vmatprep.subr.mxu0 0.0
    %136 = vmatpush1.msra.mxu0 0.0
    %137 = vmatprep.subr.mxu0 0.0
    %138 = vmatpush1.msra.mxu0 0.0
    %139 = vmatprep.subr.mxu0 0.0
    %140 = vmatpush1.msra.mxu0 0.0
    %141 = vmatprep.subr.mxu0 0.0
    %142 = vmatpush1.msra.mxu0 0.0
    %143 = vmatprep.subr.mxu0 0.0
    %144 = vmatpush1.msra.mxu0 0.0
    %145 = vmatprep.subr.mxu0 0.0
    %146 = vmatpush1.msra.mxu0 0.0
    %147 = vmatprep.subr.mxu0 0.0
    %148 = vmatpush1.msra.mxu0 0.0
    %149 = vmatprep.subr.mxu0 0.0
    %150 = vmatpush1.msra.mxu0 0.0
    %151 = vmatprep.subr.mxu0 0.0
    %152 = vmatpush1.msra.mxu0 0.0
    %153 = vmatprep.subr.mxu0 0.0
    %154 = vmatpush1.msra.mxu0 0.0
    %155 = vmatprep.subr.mxu0 0.0
    %156 = vmatpush1.msra.mxu0 0.0
    %157 = vmatprep.subr.mxu0 0.0
    %158 = vmatpush1.msra.mxu0 0.0
    %159 = vmatprep.subr.mxu0 0.0
    %160 = vmatpush1.msra.mxu0 0.0
    %161 = vmatprep.subr.mxu0 0.0
    %162 = vmatpush1.msra.mxu0 0.0
    %163 = vmatprep.subr.mxu0 0.0
    %164 = vmatpush1.msra.mxu0 0.0
    %165 = vmatprep.subr.mxu0 0.0
    %166 = vmatpush1.msra.mxu0 0.0
    %167 = vmatprep.subr.mxu0 0.0
    %168 = vmatpush1.msra.mxu0 0.0
    %169 = vmatprep.subr.mxu0 0.0
    %170 = vmatpush1.msra.mxu0 0.0
    %171 = vmatprep.subr.mxu0 0.0
    %172 = vmatpush1.msra.mxu0 0.0
    %173 = vmatprep.subr.mxu0 0.0
    %174 = vmatpush1.msra.mxu0 0.0
    %175 = vmatprep.subr.mxu0 0.0
    %176 = vmatpush1.msra.mxu0 0.0
    %177 = vmatprep.subr.mxu0 0.0
    %178 = vmatpush1.msra.mxu0 0.0
    %179 = vmatprep.subr.mxu0 0.0
    %180 = vmatpush1.msra.mxu0 0.0
    %181 = vmatprep.subr.mxu0 0.0
    %182 = vmatpush1.msra.mxu0 0.0
    %183 = vmatprep.subr.mxu0 0.0
    %184 = vmatpush1.msra.mxu0 0.0
    %185 = vmatprep.subr.mxu0 0.0
    %186 = vmatpush1.msra.mxu0 0.0
    %187 = vmatprep.mubr.f32.mxu0 0.0
    %188 = vmatmul.mubr.f32.gmra.mrb[0].mxu0 %v118
    %v189 = vpop.f32.mrb[0].mxu0
    %v190 = vadd.f32 0.0, %v189
    %v191 = vpop.f32.mrb[0].mxu0
    %192 = vmatprep.mubr.f32.mxu0 0.0
    %193 = vmatmul.mubr.f32.gmra.mrb[0].mxu0 %v121
    %v194 = vpop.f32.mrb[0].mxu0
    %v195 = vadd.f32 0.0, %v194
    %v196 = vpop.f32.mrb[0].mxu0
    %197 = vdwg.mxu0
    %198 = vst.msk [vmem:[#allocation13] sm:$0xff] %vm116, %v190
    %199 = vst.msk [vmem:[#allocation13 + $0x8] sm:$0xff] %vm116, %v195
    %v200 = vld [vmem:[#allocation5] sm:$0xff]
    %v201 = vld [vmem:[#allocation5 + $0x8] sm:$0xff]
    %v202 = vld [vmem:[#allocation10] sm:$0xff]
    %v203 = vld [vmem:[#allocation10 + $0x8] sm:$0xff]
    %v204 = vld [vmem:[#allocation10 + $0x10] sm:$0xff]
    %v205 = vld [vmem:[#allocation10 + $0x18] sm:$0xff]
    %v207 = vsel %vm116, %v200, 0
    %v210 = vsel %vm116, %v201, 0
    %212 = vmatprep.subr.mxu0 0.0
    %213 = vmatpush1.msra.mxu0 %v202
    %214 = vmatprep.subr.mxu0 0.0
    %215 = vmatpush1.msra.mxu0 %v203
    %216 = vmatprep.subr.mxu0 0.0
    %217 = vmatpush1.msra.mxu0 %v204
    %218 = vmatprep.subr.mxu0 0.0
    %219 = vmatpush1.msra.mxu0 %v205
    %220 = vmatprep.subr.mxu0 0.0
    %221 = vmatpush1.msra.mxu0 0.0
    %222 = vmatprep.subr.mxu0 0.0
    %223 = vmatpush1.msra.mxu0 0.0
    %224 = vmatprep.subr.mxu0 0.0
    %225 = vmatpush1.msra.mxu0 0.0
    %226 = vmatprep.subr.mxu0 0.0
    %227 = vmatpush1.msra.mxu0 0.0
    %228 = vmatprep.subr.mxu0 0.0
    %229 = vmatpush1.msra.mxu0 0.0
    %230 = vmatprep.subr.mxu0 0.0
    %231 = vmatpush1.msra.mxu0 0.0
    %232 = vmatprep.subr.mxu0 0.0
    %233 = vmatpush1.msra.mxu0 0.0
    %234 = vmatprep.subr.mxu0 0.0
    %235 = vmatpush1.msra.mxu0 0.0
    %236 = vmatprep.subr.mxu0 0.0
    %237 = vmatpush1.msra.mxu0 0.0
    %238 = vmatprep.subr.mxu0 0.0
    %239 = vmatpush1.msra.mxu0 0.0
    %240 = vmatprep.subr.mxu0 0.0
    %241 = vmatpush1.msra.mxu0 0.0
    %242 = vmatprep.subr.mxu0 0.0
    %243 = vmatpush1.msra.mxu0 0.0
    %244 = vmatprep.subr.mxu0 0.0
    %245 = vmatpush1.msra.mxu0 0.0
    %246 = vmatprep.subr.mxu0 0.0
    %247 = vmatpush1.msra.mxu0 0.0
    %248 = vmatprep.subr.mxu0 0.0
    %249 = vmatpush1.msra.mxu0 0.0
    %250 = vmatprep.subr.mxu0 0.0
    %251 = vmatpush1.msra.mxu0 0.0
    %252 = vmatprep.subr.mxu0 0.0
    %253 = vmatpush1.msra.mxu0 0.0
    %254 = vmatprep.subr.mxu0 0.0
    %255 = vmatpush1.msra.mxu0 0.0
    %256 = vmatprep.subr.mxu0 0.0
    %257 = vmatpush1.msra.mxu0 0.0
    %258 = vmatprep.subr.mxu0 0.0
    %259 = vmatpush1.msra.mxu0 0.0
    %260 = vmatprep.subr.mxu0 0.0
    %261 = vmatpush1.msra.mxu0 0.0
    %262 = vmatprep.subr.mxu0 0.0
    %263 = vmatpush1.msra.mxu0 0.0
    %264 = vmatprep.subr.mxu0 0.0
    %265 = vmatpush1.msra.mxu0 0.0
    %266 = vmatprep.subr.mxu0 0.0
    %267 = vmatpush1.msra.mxu0 0.0
    %268 = vmatprep.subr.mxu0 0.0
    %269 = vmatpush1.msra.mxu0 0.0
    %270 = vmatprep.subr.mxu0 0.0
    %271 = vmatpush1.msra.mxu0 0.0
    %272 = vmatprep.subr.mxu0 0.0
    %273 = vmatpush1.msra.mxu0 0.0
    %274 = vmatprep.subr.mxu0 0.0
    %275 = vmatpush1.msra.mxu0 0.0
    %276 = vmatprep.mubr.f32.mxu0 0.0
    %277 = vmatmul.mubr.f32.gmra.mrb[0].mxu0 %v207
    %v278 = vpop.f32.mrb[0].mxu0
    %v279 = vadd.f32 0.0, %v278
    %v280 = vpop.f32.mrb[0].mxu0
    %281 = vmatprep.mubr.f32.mxu0 0.0
    %282 = vmatmul.mubr.f32.gmra.mrb[0].mxu0 %v210
    %v283 = vpop.f32.mrb[0].mxu0
    %v284 = vadd.f32 0.0, %v283
    %v285 = vpop.f32.mrb[0].mxu0
    %286 = vdwg.mxu0
    %287 = vst.msk [vmem:[#allocation14] sm:$0xff] %vm116, %v279
    %288 = vst.msk [vmem:[#allocation14 + $0x8] sm:$0xff] %vm116, %v284
    %v289 = vld [vmem:[#allocation7] sm:$0xff]
    %v290 = vld [vmem:[#allocation7 + $0x8] sm:$0xff]
    %v291 = vld [vmem:[#allocation11] sm:$0xff]
    %v292 = vld [vmem:[#allocation11 + $0x8] sm:$0xff]
    %v293 = vld [vmem:[#allocation11 + $0x10] sm:$0xff]
    %v294 = vld [vmem:[#allocation11 + $0x18] sm:$0xff]
    %v296 = vsel %vm116, %v289, 0
    %v299 = vsel %vm116, %v290, 0
    %301 = vmatprep.subr.mxu0 0.0
    %302 = vmatpush1.msra.mxu0 %v291
    %303 = vmatprep.subr.mxu0 0.0
    %304 = vmatpush1.msra.mxu0 %v292
    %305 = vmatprep.subr.mxu0 0.0
    %306 = vmatpush1.msra.mxu0 %v293
    %307 = vmatprep.subr.mxu0 0.0
    %308 = vmatpush1.msra.mxu0 %v294
    %309 = vmatprep.subr.mxu0 0.0
    %310 = vmatpush1.msra.mxu0 0.0
    %311 = vmatprep.subr.mxu0 0.0
    %312 = vmatpush1.msra.mxu0 0.0
    %313 = vmatprep.subr.mxu0 0.0
    %314 = vmatpush1.msra.mxu0 0.0
    %315 = vmatprep.subr.mxu0 0.0
    %316 = vmatpush1.msra.mxu0 0.0
    %317 = vmatprep.subr.mxu0 0.0
    %318 = vmatpush1.msra.mxu0 0.0
    %319 = vmatprep.subr.mxu0 0.0
    %320 = vmatpush1.msra.mxu0 0.0
    %321 = vmatprep.subr.mxu0 0.0
    %322 = vmatpush1.msra.mxu0 0.0
    %323 = vmatprep.subr.mxu0 0.0
    %324 = vmatpush1.msra.mxu0 0.0
    %325 = vmatprep.subr.mxu0 0.0
    %326 = vmatpush1.msra.mxu0 0.0
    %327 = vmatprep.subr.mxu0 0.0
    %328 = vmatpush1.msra.mxu0 0.0
    %329 = vmatprep.subr.mxu0 0.0
    %330 = vmatpush1.msra.mxu0 0.0
    %331 = vmatprep.subr.mxu0 0.0
    %332 = vmatpush1.msra.mxu0 0.0
    %333 = vmatprep.subr.mxu0 0.0
    %334 = vmatpush1.msra.mxu0 0.0
    %335 = vmatprep.subr.mxu0 0.0
    %336 = vmatpush1.msra.mxu0 0.0
    %337 = vmatprep.subr.mxu0 0.0
    %338 = vmatpush1.msra.mxu0 0.0
    %339 = vmatprep.subr.mxu0 0.0
    %340 = vmatpush1.msra.mxu0 0.0
    %341 = vmatprep.subr.mxu0 0.0
    %342 = vmatpush1.msra.mxu0 0.0
    %343 = vmatprep.subr.mxu0 0.0
    %344 = vmatpush1.msra.mxu0 0.0
    %345 = vmatprep.subr.mxu0 0.0
    %346 = vmatpush1.msra.mxu0 0.0
    %347 = vmatprep.subr.mxu0 0.0
    %348 = vmatpush1.msra.mxu0 0.0
    %349 = vmatprep.subr.mxu0 0.0
    %350 = vmatpush1.msra.mxu0 0.0
    %351 = vmatprep.subr.mxu0 0.0
    %352 = vmatpush1.msra.mxu0 0.0
    %353 = vmatprep.subr.mxu0 0.0
    %354 = vmatpush1.msra.mxu0 0.0
    %355 = vmatprep.subr.mxu0 0.0
    %356 = vmatpush1.msra.mxu0 0.0
    %357 = vmatprep.subr.mxu0 0.0
    %358 = vmatpush1.msra.mxu0 0.0
    %359 = vmatprep.subr.mxu0 0.0
    %360 = vmatpush1.msra.mxu0 0.0
    %361 = vmatprep.subr.mxu0 0.0
    %362 = vmatpush1.msra.mxu0 0.0
    %363 = vmatprep.subr.mxu0 0.0
    %364 = vmatpush1.msra.mxu0 0.0
    %365 = vmatprep.mubr.f32.mxu0 0.0
    %366 = vmatmul.mubr.f32.gmra.mrb[0].mxu0 %v296
    %v367 = vpop.f32.mrb[0].mxu0
    %v368 = vadd.f32 0.0, %v367
    %v369 = vpop.f32.mrb[0].mxu0
    %370 = vmatprep.mubr.f32.mxu0 0.0
    %371 = vmatmul.mubr.f32.gmra.mrb[0].mxu0 %v299
    %v372 = vpop.f32.mrb[0].mxu0
    %v373 = vadd.f32 0.0, %v372
    %v374 = vpop.f32.mrb[0].mxu0
    %375 = vdwg.mxu0
    %376 = vst.msk [vmem:[#allocation16] sm:$0xff] %vm116, %v368
    %377 = vst.msk [vmem:[#allocation16 + $0x8] sm:$0xff] %vm116, %v373
    // Predicated region
    $region50: #{tpu_custom_call.1} parent=1 // pred_check
      _
    $region51: #{tpu_custom_call.1} parent=1 // pred_check_branch
      %379 = sbr.rel (0) target = $region53
    $region52: #{tpu_custom_call.1} parent=1 // pred_region
      %s381 = ssub.s32 256, 256
      %382 = vsyncadd [#allocation4], %s381
      %s383 = sshll.u32 [#allocation13], 4
      %s384 = int_to_ptr.vmem [resolvable:$true] %s383
      %389 = dma.vmem_to_hbm [thread:$0]  %s384, 256, %s6, [#allocation4], 128, 128, 8
    $region53: #{tpu_custom_call.1} parent=1 // pred_fallthru
      _
    // Predicated region
    $region54: #{tpu_custom_call.1} parent=1 // pred_check
      _
    $region55: #{tpu_custom_call.1} parent=1 // pred_check_branch
      %391 = sbr.rel (0) target = $region57
    $region56: #{tpu_custom_call.1} parent=1 // pred_region
      %s393 = ssub.s32 256, 256
      %394 = vsyncadd [#allocation15], %s393
      %s395 = sshll.u32 [#allocation14], 4
      %s396 = int_to_ptr.vmem [resolvable:$true] %s395
      %401 = dma.vmem_to_hbm [thread:$0]  %s396, 256, %s7, [#allocation15], 128, 128, 8
    $region57: #{tpu_custom_call.1} parent=1 // pred_fallthru
      _
    // Predicated region
    $region58: #{tpu_custom_call.1} parent=1 // pred_check
      _
    $region59: #{tpu_custom_call.1} parent=1 // pred_check_branch
      %403 = sbr.rel (0) target = $region61
    $region60: #{tpu_custom_call.1} parent=1 // pred_region
      %s405 = ssub.s32 256, 256
      %406 = vsyncadd [#allocation15], %s405
      %s407 = sshll.u32 [#allocation16], 4
      %s408 = int_to_ptr.vmem [resolvable:$true] %s407
      %413 = dma.vmem_to_hbm [thread:$0]  %s408, 256, %s8, [#allocation15], 128, 128, 8
    $region61: #{tpu_custom_call.1} parent=1 // pred_fallthru
      _
    // Predicated region
    $region62: #{tpu_custom_call.1} parent=1 // pred_check
      _
    $region63: #{tpu_custom_call.1} parent=1 // pred_check_branch
      %415 = sbr.rel (0) target = $region65
    $region64: #{tpu_custom_call.1} parent=1 // pred_region
      %416 = dma.done [#allocation4], 256
    $region65: #{tpu_custom_call.1} parent=1 // pred_fallthru
      _
    // Predicated region
    $region66: #{tpu_custom_call.1} parent=1 // pred_check
      _
    $region67: #{tpu_custom_call.1} parent=1 // pred_check_branch
      %418 = sbr.rel (0) target = $region69
    $region68: #{tpu_custom_call.1} parent=1 // pred_region
      %419 = dma.done [#allocation15], 256
    $region69: #{tpu_custom_call.1} parent=1 // pred_fallthru
      _
    // Predicated region
    $region70: #{tpu_custom_call.1} parent=1 // pred_check
      _
    $region71: #{tpu_custom_call.1} parent=1 // pred_check_branch
      %421 = sbr.rel (0) target = $region73
    $region72: #{tpu_custom_call.1} parent=1 // pred_region
      %422 = dma.done [#allocation15], 256
    $region73: #{tpu_custom_call.1} parent=1 // pred_fallthru
      _
    %423 = vsyncpa [#allocation3], 1
    %424 = vsyncpa [#allocation6], 1
    %425 = vsyncpa [#allocation9], 1
    %426 = vsyncpa [#allocation12], 1
    %427 = vsyncpa [#allocation4], 1
    %428 = vsyncpa [#allocation15], 1

</llo_original>
